<compile_context>
chip_gen: v5e
topology: v5e:2x2
jax: 0.10.0
libtpu: 0.0.40
codegen_flags: <defaults>
</compile_context>

<pallas_src>
import jax
import jax.numpy as jnp
from jax.experimental import pallas as pl
from jax.experimental.pallas import tpu as pltpu


# ----------------------------- Pallas kernel --------------------------------
def gcn_layers_kernel(p_ref, x_ref, wt_ref, bias_ref, out_ref):
    # p_ref:    (Np, Np)    row-scaled block-diagonal (A + I) / denom
    # x_ref:    (Np, Dp)    flattened, lane-padded gcn inputs
    # wt_ref:   (L, Dp, Dp) stacked, lane-padded W^T
    # bias_ref: (L, Np, Dp) stacked (2*bias)/denom, pre-scaled per row
    num_layers = wt_ref.shape[0]

    p = p_ref[...]                                        # loop-invariant, read once
    x = x_ref[...]

    for l in range(num_layers):                           # static unroll over layers
        # ((A + I) x) / denom  -- single dense MXU push over the whole slab.
        h = jnp.dot(p, x, preferred_element_type=jnp.float32)
        # Fused linear: (W(Ax)+b + W(x)+b)/denom == h @ W^T + 2b/denom; relu.
        x = jnp.maximum(
            jnp.dot(h, wt_ref[l], preferred_element_type=jnp.float32) + bias_ref[l],
            0.0)
        # gcn_drop = identity; layer_normalization output is discarded in reference.

    out_ref[...] = x


def gcn_layers_pallas(adj, x, w_t_stack, bias_stack):
    B, T, D = x.shape
    L = w_t_stack.shape[0]
    N = B * T

    # Denominator / mask reductions stay in plain JAX (XLA fuses them; keeps
    # XLU reductions and the reciprocal out of the kernel).
    row_sum = adj.sum(2)                                  # (B, T)
    inv_denom = 1.0 / (row_sum + 1.0)                     # (B, T)
    # NOTE: relies on adj being exactly binary float32, as in the reference.
    mask = ((row_sum + adj.sum(1)) == 0.0)[..., None]     # (B, T, 1)

    # Row-scaled block-diagonal P = D^{-1} (A + I), shape (N, N).
    p_blocks = (adj + jnp.eye(T, dtype=jnp.float32)) * inv_denom[..., None]  # (B,T,T)
    p = jnp.einsum('bc,bij->bicj', jnp.eye(B, dtype=jnp.float32),
                   p_blocks).reshape(N, N)

    # Pre-scaled double bias: 2*bias / denom, per row.  (L, N, D)
    bias2 = 2.0 * bias_stack * inv_denom.reshape(1, N, 1)

    # Lane-dense / sublane-aligned zero padding; padded cols/rows stay exactly
    # zero through every layer (zero W cols + zero bias + relu), sliced off after.
    Dp = pl.cdiv(D, 128) * 128
    Np = pl.cdiv(N, 8) * 8
    x_flat = jnp.pad(x.reshape(N, D), ((0, Np - N), (0, Dp - D)))
    p_pad = jnp.pad(p, ((0, Np - N), (0, Np - N)))
    wt_pad = jnp.pad(w_t_stack, ((0, 0), (0, Dp - D), (0, Dp - D)))
    bias2_pad = jnp.pad(bias2, ((0, 0), (0, Np - N), (0, Dp - D)))

    out_flat = pl.pallas_call(
        gcn_layers_kernel,
        out_shape=jax.ShapeDtypeStruct((Np, Dp), jnp.float32),
        grid=(1,),                                        # whole (tiny) problem in one step
        in_specs=[
            pl.BlockSpec((Np, Np), lambda i: (0, 0)),         # P (row-scaled A+I)
            pl.BlockSpec((Np, Dp), lambda i: (0, 0)),         # gcn inputs, flattened
            pl.BlockSpec((L, Dp, Dp), lambda i: (0, 0, 0)),   # stacked W^T
            pl.BlockSpec((L, Np, Dp), lambda i: (0, 0, 0)),   # stacked 2*bias/denom
        ],
        out_specs=pl.BlockSpec((Np, Dp), lambda i: (0, 0)),
        compiler_params=pltpu.CompilerParams(dimension_semantics=("arbitrary",)),
    )(p_pad, x_flat, wt_pad, bias2_pad)

    out = out_flat[:N, :D].reshape(B, T, D)
    return out, mask


# ----------------------- Bidirectional LSTM encoder (glue) ------------------
def _lstm_dir(x, params, reverse):
    # PyTorch nn.LSTM layout: w_ih (4H, I), w_hh (4H, H), gate order i, f, g, o.
    w_ih, w_hh, b_ih, b_hh = params
    h_dim = w_hh.shape[1]
    bsz = x.shape[0]
    xs = jnp.swapaxes(x, 0, 1)                            # (T, B, I)
    if reverse:
        xs = xs[::-1]

    def step(carry, x_t):
        h, c = carry
        gates = x_t @ w_ih.T + h @ w_hh.T + b_ih + b_hh
        i = jax.nn.sigmoid(gates[:, 0:h_dim])
        f = jax.nn.sigmoid(gates[:, h_dim:2 * h_dim])
        g = jnp.tanh(gates[:, 2 * h_dim:3 * h_dim])
        o = jax.nn.sigmoid(gates[:, 3 * h_dim:4 * h_dim])
        c_new = f * c + i * g
        h_new = o * jnp.tanh(c_new)
        return (h_new, c_new), h_new

    init_carry = (jnp.zeros((bsz, h_dim), x.dtype), jnp.zeros((bsz, h_dim), x.dtype))
    _, hs = jax.lax.scan(step, init_carry, xs)
    if reverse:
        hs = hs[::-1]
    return jnp.swapaxes(hs, 0, 1)                         # (B, T, H)


def encode_with_rnn(embs, masks, fwd_params, bwd_params):
    # TODO(synk): pack_padded_sequence variable-length handling not implemented;
    # masks are assumed all-ones (full-length sequences), so sort/pack is a no-op.
    h_fwd = _lstm_dir(embs, fwd_params, reverse=False)
    h_bwd = _lstm_dir(embs, bwd_params, reverse=True)
    return jnp.concatenate([h_fwd, h_bwd], axis=-1)       # (B, T, 2H)


def gcn_forward(adj, embs, masks, fwd_params, bwd_params, w_t_stack, bias_stack):
    gcn_inputs = encode_with_rnn(embs, masks, fwd_params, bwd_params)
    return gcn_layers_pallas(adj, gcn_inputs, w_t_stack, bias_stack)


# ------------------------------ Pure-JAX reference --------------------------
def gcn_layers_ref(adj, x, w_t_stack, bias_stack):
    # Exact PyTorch association: W(Ax) + b + W(x) + b, then /denom, relu.
    denom = adj.sum(2)[..., None] + 1.0
    mask = ((adj.sum(2) + adj.sum(1)) == 0)[..., None]
    for l in range(w_t_stack.shape[0]):
        ax = jnp.einsum('btk,bkd->btd', adj, x)
        axw = ax @ w_t_stack[l] + bias_stack[l] + x @ w_t_stack[l] + bias_stack[l]
        axw = axw / denom
        x = jax.nn.relu(axw)
    return x, mask


# ----------------------------------- main ------------------------------------
if __name__ == "__main__":
    B, T = 2, 8                  # batch, sequence length
    input_dim = 32               # embedding dim (LSTM input size)
    hidden = 16                  # config.gcn_rnn_hidden
    in_dim = 2 * hidden          # bidirectional -> GCN feature dim D
    num_gcn_layers = 2           # GCN num_layers

    key = jax.random.PRNGKey(0)
    keys = jax.random.split(key, 12)

    def init(k, shape, scale=0.1):
        return scale * jax.random.normal(k, shape, jnp.float32)

    embs = jax.random.normal(keys[0], (B, T, input_dim), jnp.float32)
    adj = (jax.random.uniform(keys[1], (B, T, T)) < 0.3).astype(jnp.float32)
    masks = jnp.ones((B, T), jnp.float32)

    # Bidirectional single-layer LSTM params (config.gcn_rnn_layers = 1).
    fwd_params = (init(keys[2], (4 * hidden, input_dim)),
                  init(keys[3], (4 * hidden, hidden)),
                  init(keys[4], (4 * hidden,)),
                  init(keys[5], (4 * hidden,)))
    bwd_params = (init(keys[6], (4 * hidden, input_dim)),
                  init(keys[7], (4 * hidden, hidden)),
                  init(keys[8], (4 * hidden,)),
                  init(keys[9], (4 * hidden,)))

    # GCN layer weights: nn.Linear(in_dim, in_dim) per layer; store W^T stacked.
    w_stack = jnp.stack([init(jax.random.fold_in(keys[10], l), (in_dim, in_dim))
                         for l in range(num_gcn_layers)])          # (L, D, D)
    w_t_stack = jnp.swapaxes(w_stack, 1, 2)                        # pre-transposed
    bias_stack = jnp.stack([init(jax.random.fold_in(keys[11], l), (1, in_dim))
                            for l in range(num_gcn_layers)])       # (L, 1, D)

    out, mask = jax.block_until_ready(
        gcn_forward(adj, embs, masks, fwd_params, bwd_params, w_t_stack, bias_stack))

    # Correctness check of the Pallas portion against the unfused pure-JAX
    # reference.  Tolerance is 1e-3: the kernel uses the algebraically fused
    # (P x) @ W^T + 2b/denom form (row-scaling commutes with the right matmul),
    # so bit-identical agreement with the unfused association is not expected
    # under TPU MXU rounding, but 1e-3 abs on values of magnitude ~0.1 still
    # catches any real implementation bug.
    gcn_in = encode_with_rnn(embs, masks, fwd_params, bwd_params)
    out_ref, mask_ref = gcn_layers_ref(adj, gcn_in, w_t_stack, bias_stack)
    assert out.shape == (B, T, in_dim) and mask.shape == (B, T, 1)
    assert jnp.allclose(out, out_ref, atol=1e-3, rtol=1e-3)
    assert jnp.array_equal(mask, mask_ref)

    print("KERNEL_OK")
</pallas_src>

<mosaic_0001>
module attributes {stable_mosaic.version = 11 : i64} {
  func.func @gcn_layers_kernel(%arg0: i32, %arg1: memref<16x16xf32, #tpu.memory_space<vmem>>, %arg2: memref<16x128xf32, #tpu.memory_space<vmem>>, %arg3: memref<2x128x128xf32, #tpu.memory_space<vmem>>, %arg4: memref<2x16x128xf32, #tpu.memory_space<vmem>>, %arg5: memref<16x128xf32, #tpu.memory_space<vmem>>) attributes {dimension_semantics = [#tpu.dimension_semantics<arbitrary>], iteration_bounds = array<i64: 1>, scalar_prefetch = 0 : i64, scratch_operands = 0 : i64, tpu.core_type = #tpu.core_type<tc>, window_params = [{pipeline_mode = #tpu.pipeline_mode<synchronous>, transform_indices = @transform_0, window_bounds = array<i64: 16, 16>}, {pipeline_mode = #tpu.pipeline_mode<synchronous>, transform_indices = @transform_1, window_bounds = array<i64: 16, 128>}, {pipeline_mode = #tpu.pipeline_mode<synchronous>, transform_indices = @transform_2, window_bounds = array<i64: 2, 128, 128>}, {pipeline_mode = #tpu.pipeline_mode<synchronous>, transform_indices = @transform_3, window_bounds = array<i64: 2, 16, 128>}, {pipeline_mode = #tpu.pipeline_mode<synchronous>, transform_indices = @transform_4, window_bounds = array<i64: 16, 128>}]} {
    %c0 = arith.constant 0 : index
    %c0_0 = arith.constant 0 : index
    %0 = vector.load %arg1[%c0, %c0_0] : memref<16x16xf32, #tpu.memory_space<vmem>>, vector<16x16xf32>
    %c0_1 = arith.constant 0 : index
    %c0_2 = arith.constant 0 : index
    %1 = vector.load %arg2[%c0_1, %c0_2] : memref<16x128xf32, #tpu.memory_space<vmem>>, vector<16x128xf32>
    %cst = arith.constant dense<0.000000e+00> : vector<16x128xf32>
    %2 = tpu.matmul %0, %1, %cst {dimension_numbers = #tpu.dot_dimension_numbers<[1], [0], [0], [1], [0, 0, 1, 1], [], []>} : vector<16x16xf32>, vector<16x128xf32>, vector<16x128xf32> -> vector<16x128xf32>
    %c0_3 = arith.constant 0 : index
    %c0_4 = arith.constant 0 : index
    %c0_5 = arith.constant 0 : index
    %3 = vector.load %arg3[%c0_3, %c0_4, %c0_5] : memref<2x128x128xf32, #tpu.memory_space<vmem>>, vector<1x128x128xf32>
    %4 = vector.shape_cast %3 : vector<1x128x128xf32> to vector<128x128xf32>
    %cst_6 = arith.constant dense<0.000000e+00> : vector<16x128xf32>
    %5 = tpu.matmul %2, %4, %cst_6 {dimension_numbers = #tpu.dot_dimension_numbers<[1], [0], [0], [1], [0, 0, 1, 1], [], []>} : vector<16x128xf32>, vector<128x128xf32>, vector<16x128xf32> -> vector<16x128xf32>
    %c0_7 = arith.constant 0 : index
    %c0_8 = arith.constant 0 : index
    %c0_9 = arith.constant 0 : index
    %6 = vector.load %arg4[%c0_7, %c0_8, %c0_9] : memref<2x16x128xf32, #tpu.memory_space<vmem>>, vector<1x16x128xf32>
    %7 = vector.shape_cast %6 : vector<1x16x128xf32> to vector<16x128xf32>
    %8 = arith.addf %5, %7 : vector<16x128xf32>
    %cst_10 = arith.constant 0.000000e+00 : f32
    %9 = vector.broadcast %cst_10 : f32 to vector<16x128xf32>
    %10 = arith.maximumf %8, %9 : vector<16x128xf32>
    %cst_11 = arith.constant dense<0.000000e+00> : vector<16x128xf32>
    %11 = tpu.matmul %0, %10, %cst_11 {dimension_numbers = #tpu.dot_dimension_numbers<[1], [0], [0], [1], [0, 0, 1, 1], [], []>} : vector<16x16xf32>, vector<16x128xf32>, vector<16x128xf32> -> vector<16x128xf32>
    %c1 = arith.constant 1 : index
    %c0_12 = arith.constant 0 : index
    %c0_13 = arith.constant 0 : index
    %12 = vector.load %arg3[%c1, %c0_12, %c0_13] : memref<2x128x128xf32, #tpu.memory_space<vmem>>, vector<1x128x128xf32>
    %13 = vector.shape_cast %12 : vector<1x128x128xf32> to vector<128x128xf32>
    %cst_14 = arith.constant dense<0.000000e+00> : vector<16x128xf32>
    %14 = tpu.matmul %11, %13, %cst_14 {dimension_numbers = #tpu.dot_dimension_numbers<[1], [0], [0], [1], [0, 0, 1, 1], [], []>} : vector<16x128xf32>, vector<128x128xf32>, vector<16x128xf32> -> vector<16x128xf32>
    %c1_15 = arith.constant 1 : index
    %c0_16 = arith.constant 0 : index
    %c0_17 = arith.constant 0 : index
    %15 = vector.load %arg4[%c1_15, %c0_16, %c0_17] : memref<2x16x128xf32, #tpu.memory_space<vmem>>, vector<1x16x128xf32>
    %16 = vector.shape_cast %15 : vector<1x16x128xf32> to vector<16x128xf32>
    %17 = arith.addf %14, %16 : vector<16x128xf32>
    %cst_18 = arith.constant 0.000000e+00 : f32
    %18 = vector.broadcast %cst_18 : f32 to vector<16x128xf32>
    %19 = arith.maximumf %17, %18 : vector<16x128xf32>
    %c0_19 = arith.constant 0 : index
    %c0_20 = arith.constant 0 : index
    %20 = vector.load %arg5[%c0_19, %c0_20] : memref<16x128xf32, #tpu.memory_space<vmem>>, vector<16x128xf32>
    tpu.vector_store %arg5[%c0_19, %c0_20], %19 {strides = array<i32>} : memref<16x128xf32, #tpu.memory_space<vmem>>, vector<16x128xf32>,
    return
  }
  func.func @transform_0(%arg0: i32) -> (i32, i32) {
    %c0_i32 = arith.constant 0 : i32
    %c0_i32_0 = arith.constant 0 : i32
    %c0_i32_1 = arith.constant 0 : i32
    return %c0_i32, %c0_i32_0 : i32, i32
  }
  func.func @transform_1(%arg0: i32) -> (i32, i32) {
    %c0_i32 = arith.constant 0 : i32
    %c0_i32_0 = arith.constant 0 : i32
    %c0_i32_1 = arith.constant 0 : i32
    return %c0_i32, %c0_i32_0 : i32, i32
  }
  func.func @transform_2(%arg0: i32) -> (i32, i32, i32) {
    %c0_i32 = arith.constant 0 : i32
    %c0_i32_0 = arith.constant 0 : i32
    %c0_i32_1 = arith.constant 0 : i32
    %c0_i32_2 = arith.constant 0 : i32
    return %c0_i32, %c0_i32_0, %c0_i32_1 : i32, i32, i32
  }
  func.func @transform_3(%arg0: i32) -> (i32, i32, i32) {
    %c0_i32 = arith.constant 0 : i32
    %c0_i32_0 = arith.constant 0 : i32
    %c0_i32_1 = arith.constant 0 : i32
    %c0_i32_2 = arith.constant 0 : i32
    return %c0_i32, %c0_i32_0, %c0_i32_1 : i32, i32, i32
  }
  func.func @transform_4(%arg0: i32) -> (i32, i32) {
    %c0_i32 = arith.constant 0 : i32
    %c0_i32_0 = arith.constant 0 : i32
    %c0_i32_1 = arith.constant 0 : i32
    return %c0_i32, %c0_i32_0 : i32, i32
  }
}

</mosaic_0001>

<llo_original>
// kernel: tpu_custom_call.1
$region0: #{tpu_custom_call.1}
  #allocation0 [shape = 'u32[]', space=smem, size = 0x4, offset = 0x4, fixed_abs, tag = 'smem constant byte address 0x4 - core index']
  #allocation1 [shape = 'u32[72,128]{1,0:T(1,128)}', space=vmem, size = 0x9000, scoped, tag = 'internal scratch']
  %s0 = inlined_call_operand.hbm [shape: f32[16,16], index: 0, kind: input, shape index: {}]
  %s1 = inlined_call_operand.hbm [shape: f32[16,128], index: 1, kind: input, shape index: {}]
  %s2 = inlined_call_operand.hbm [shape: f32[2,128,128], index: 2, kind: input, shape index: {}]
  %s3 = inlined_call_operand.hbm [shape: f32[2,16,128], index: 3, kind: input, shape index: {}]
  %s4 = inlined_call_operand.hbm [shape: f32[16,128], index: 4, kind: output, shape index: {}]
  %s5 = sld [smem:[#allocation0]]
  $region42: #{tpu_custom_call.1} parent=0
    _
  %s7 = ssub.s32 1, %s5
  %s8 = scalar_select 0, %s7, %s5
  $region1: #{tpu_custom_call.1} parent=0
    #allocation2 [shape = 'u8[8192]{0}', space=vmem, size = 0x2000, scoped, tag = 'input window, operand 0, single buffered']
    #allocation3 [shape = 's32[1]{0}', space=sflag, size = 0x4, scoped, tag = 'scoped memory for tpu_custom_call.1']
    #allocation4 [shape = 's32[1]{0}', space=sflag, size = 0x4, scoped, tag = 'scoped memory for tpu_custom_call.1']
    #allocation5 [shape = 'u8[8192]{0}', space=vmem, size = 0x2000, scoped, tag = 'input window, operand 1, single buffered']
    #allocation6 [shape = 's32[1]{0}', space=sflag, size = 0x4, scoped, tag = 'scoped memory for tpu_custom_call.1']
    #allocation7 [shape = 'u8[131072]{0}', space=vmem, size = 0x20000, scoped, tag = 'input window, operand 2, single buffered']
    #allocation8 [shape = 'u8[16384]{0}', space=vmem, size = 0x4000, scoped, tag = 'input window, operand 3, single buffered']
    #allocation9 [shape = 's32[1]{0}', space=sflag, size = 0x4, scoped, tag = 'scoped memory for tpu_custom_call.1']
    #allocation10 [shape = 'u8[8192]{0}', space=vmem, size = 0x2000, scoped, tag = 'output window, operand 0, single buffered']
    %9 = vsyncpa [#allocation3], 0
    %10 = vsyncpa [#allocation6], 0
    %11 = vsyncpa [#allocation9], 0
    %12 = vsyncpa [#allocation4], 0
    // Predicated region
    $region2: #{tpu_custom_call.1} parent=1 // pred_check
      _
    $region3: #{tpu_custom_call.1} parent=1 // pred_check_branch
      %14 = sbr.rel (0) target = $region5
    $region4: #{tpu_custom_call.1} parent=1 // pred_region
      %16 = vsyncadd [#allocation3], 0
      %s17 = sshll.u32 %s0, 4
      %s18 = int_to_ptr.hbm [resolvable:$true] %s17
      %s19 = sshll.u32 [#allocation2], 4
      %s20 = int_to_ptr.vmem [resolvable:$true] %s19
      %25 = dma.hbm_to_vmem [thread:$0]  %s18, 256, %s20, [#allocation3], 128, 128, 8
    $region5: #{tpu_custom_call.1} parent=1 // pred_fallthru
      _
    // Predicated region
    $region6: #{tpu_custom_call.1} parent=1 // pred_check
      _
    $region7: #{tpu_custom_call.1} parent=1 // pred_check_branch
      %27 = sbr.rel (0) target = $region9
    $region8: #{tpu_custom_call.1} parent=1 // pred_region
      %29 = vsyncadd [#allocation6], 0
      %s30 = sshll.u32 %s1, 4
      %s31 = int_to_ptr.hbm [resolvable:$true] %s30
      %s32 = sshll.u32 [#allocation5], 4
      %s33 = int_to_ptr.vmem [resolvable:$true] %s32
      %38 = dma.hbm_to_vmem [thread:$0]  %s31, 256, %s33, [#allocation6], 128, 128, 8
    $region9: #{tpu_custom_call.1} parent=1 // pred_fallthru
      _
    // Predicated region
    $region10: #{tpu_custom_call.1} parent=1 // pred_check
      _
    $region11: #{tpu_custom_call.1} parent=1 // pred_check_branch
      %40 = sbr.rel (0) target = $region13
    $region12: #{tpu_custom_call.1} parent=1 // pred_region
      %42 = vsyncadd [#allocation6], 0
      %s43 = sshll.u32 %s2, 4
      %s44 = int_to_ptr.hbm [resolvable:$true] %s43
      %s45 = sshll.u32 [#allocation7], 4
      %s46 = int_to_ptr.vmem [resolvable:$true] %s45
      %51 = dma.hbm_to_vmem [thread:$0]  %s44, 4096, %s46, [#allocation6], 128, 128, 8
    $region13: #{tpu_custom_call.1} parent=1 // pred_fallthru
      _
    // Predicated region
    $region14: #{tpu_custom_call.1} parent=1 // pred_check
      _
    $region15: #{tpu_custom_call.1} parent=1 // pred_check_branch
      %53 = sbr.rel (0) target = $region17
    $region16: #{tpu_custom_call.1} parent=1 // pred_region
      %55 = vsyncadd [#allocation9], 0
      %s56 = sshll.u32 %s3, 4
      %s57 = int_to_ptr.hbm [resolvable:$true] %s56
      %s58 = sshll.u32 [#allocation8], 4
      %s59 = int_to_ptr.vmem [resolvable:$true] %s58
      %64 = dma.hbm_to_vmem [thread:$0]  %s57, 512, %s59, [#allocation9], 128, 128, 8
    $region17: #{tpu_custom_call.1} parent=1 // pred_fallthru
      _
    // Predicated region
    $region18: #{tpu_custom_call.1} parent=1 // pred_check
      _
    $region19: #{tpu_custom_call.1} parent=1 // pred_check_branch
      %66 = sbr.rel (0) target = $region21
    $region20: #{tpu_custom_call.1} parent=1 // pred_region
      %68 = dma.done [#allocation3], 256
    $region21: #{tpu_custom_call.1} parent=1 // pred_fallthru
      _
    // Predicated region
    $region22: #{tpu_custom_call.1} parent=1 // pred_check
      _
    $region23: #{tpu_custom_call.1} parent=1 // pred_check_branch
      %70 = sbr.rel (0) target = $region25
    $region24: #{tpu_custom_call.1} parent=1 // pred_region
      %72 = dma.done [#allocation6], 256
    $region25: #{tpu_custom_call.1} parent=1 // pred_fallthru
      _
    // Predicated region
    $region26: #{tpu_custom_call.1} parent=1 // pred_check
      _
    $region27: #{tpu_custom_call.1} parent=1 // pred_check_branch
      %74 = sbr.rel (0) target = $region29
    $region28: #{tpu_custom_call.1} parent=1 // pred_region
      %76 = dma.done [#allocation6], 4096
    $region29: #{tpu_custom_call.1} parent=1 // pred_fallthru
      _
    // Predicated region
    $region30: #{tpu_custom_call.1} parent=1 // pred_check
      _
    $region31: #{tpu_custom_call.1} parent=1 // pred_check_branch
      %78 = sbr.rel (0) target = $region33
    $region32: #{tpu_custom_call.1} parent=1 // pred_region
      %80 = dma.done [#allocation9], 512
    $region33: #{tpu_custom_call.1} parent=1 // pred_fallthru
      _
    %v81 = vld [vmem:[#allocation2] sm:$0xff]
    %v82 = vld [vmem:[#allocation2 + $0x8] sm:$0xff]
    %v83 = vld [vmem:[#allocation5] sm:$0xff]
    %v84 = vld [vmem:[#allocation5 + $0x8] sm:$0xff]
    %vm85 = vcmask 130048
    %v87 = vsel %vm85, %v81, 0
    %v90 = vsel %vm85, %v82, 0
    %92 = vmatpush.msra.mxu0 0.0
    %93 = vmatpush.msra.mxu0 0.0
    %94 = vmatpush.msra.mxu0 0.0
    %95 = vmatpush.msra.mxu0 0.0
    %96 = vmatpush.msra.mxu0 0.0
    %97 = vmatpush.msra.mxu0 0.0
    %98 = vmatpush.msra.mxu0 0.0
    %99 = vmatpush.msra.mxu0 0.0
    %100 = vmatpush.msra.mxu0 0.0
    %101 = vmatpush.msra.mxu0 0.0
    %102 = vmatpush.msra.mxu0 0.0
    %103 = vmatpush.msra.mxu0 0.0
    %104 = vmatpush.msra.mxu0 0.0
    %105 = vmatpush.msra.mxu0 0.0
    %106 = vmatpush.msra.mxu0 %v84
    %107 = vmatpush.msra.mxu0 %v83
    %108 = vmatmul.f32.gmra.mxu0 %v87
    %v109 = vpop.f32.mrf.mxu0
    %v110 = vadd.f32 0.0, %v109
    %111 = vmatmul.f32.gmra.mxu0 %v90
    %v112 = vpop.f32.mrf.mxu0
    %v113 = vadd.f32 0.0, %v112
    %114 = vdwg.mxu0
    %v115 = vld [vmem:[#allocation7] sm:$0xff]
    %v116 = vld [vmem:[#allocation7 + $0x8] sm:$0xff]
    %v117 = vld [vmem:[#allocation7 + $0x10] sm:$0xff]
    %v118 = vld [vmem:[#allocation7 + $0x18] sm:$0xff]
    %v119 = vld [vmem:[#allocation7 + $0x20] sm:$0xff]
    %v120 = vld [vmem:[#allocation7 + $0x28] sm:$0xff]
    %v121 = vld [vmem:[#allocation7 + $0x30] sm:$0xff]
    %v122 = vld [vmem:[#allocation7 + $0x38] sm:$0xff]
    %v123 = vld [vmem:[#allocation7 + $0x40] sm:$0xff]
    %v124 = vld [vmem:[#allocation7 + $0x48] sm:$0xff]
    %v125 = vld [vmem:[#allocation7 + $0x50] sm:$0xff]
    %v126 = vld [vmem:[#allocation7 + $0x58] sm:$0xff]
    %v127 = vld [vmem:[#allocation7 + $0x60] sm:$0xff]
    %v128 = vld [vmem:[#allocation7 + $0x68] sm:$0xff]
    %v129 = vld [vmem:[#allocation7 + $0x70] sm:$0xff]
    %v130 = vld [vmem:[#allocation7 + $0x78] sm:$0xff]
    %v131 = vld [vmem:[#allocation8] sm:$0xff]
    %v132 = vld [vmem:[#allocation8 + $0x8] sm:$0xff]
    %133 = vmatpush.msra.mxu0 %v130
    %134 = vmatpush.msra.mxu0 %v129
    %135 = vmatpush.msra.mxu0 %v128
    %136 = vmatpush.msra.mxu0 %v127
    %137 = vmatpush.msra.mxu0 %v126
    %138 = vmatpush.msra.mxu0 %v125
    %139 = vmatpush.msra.mxu0 %v124
    %140 = vmatpush.msra.mxu0 %v123
    %141 = vmatpush.msra.mxu0 %v122
    %142 = vmatpush.msra.mxu0 %v121
    %143 = vmatpush.msra.mxu0 %v120
    %144 = vmatpush.msra.mxu0 %v119
    %145 = vmatpush.msra.mxu0 %v118
    %146 = vmatpush.msra.mxu0 %v117
    %147 = vmatpush.msra.mxu0 %v116
    %148 = vmatpush.msra.mxu0 %v115
    %149 = vmatmul.f32.gmra.mxu0 %v110
    %v150 = vpop.f32.mrf.mxu0
    %v151 = vadd.f32 %v131, %v150
    %152 = vmatmul.f32.gmra.mxu0 %v113
    %v153 = vpop.f32.mrf.mxu0
    %v154 = vadd.f32 %v132, %v153
    %155 = vdwg.mxu0
    %v156 = vmax.f32 %v151, 0.0
    %v157 = vmax.f32 %v154, 0.0
    %158 = vmatpush.msra.mxu0 0.0
    %159 = vmatpush.msra.mxu0 0.0
    %160 = vmatpush.msra.mxu0 0.0
    %161 = vmatpush.msra.mxu0 0.0
    %162 = vmatpush.msra.mxu0 0.0
    %163 = vmatpush.msra.mxu0 0.0
    %164 = vmatpush.msra.mxu0 0.0
    %165 = vmatpush.msra.mxu0 0.0
    %166 = vmatpush.msra.mxu0 0.0
    %167 = vmatpush.msra.mxu0 0.0
    %168 = vmatpush.msra.mxu0 0.0
    %169 = vmatpush.msra.mxu0 0.0
    %170 = vmatpush.msra.mxu0 0.0
    %171 = vmatpush.msra.mxu0 0.0
    %172 = vmatpush.msra.mxu0 %v157
    %173 = vmatpush.msra.mxu0 %v156
    %174 = vmatmul.f32.gmra.mxu0 %v87
    %v175 = vpop.f32.mrf.mxu0
    %v176 = vadd.f32 0.0, %v175
    %177 = vmatmul.f32.gmra.mxu0 %v90
    %v178 = vpop.f32.mrf.mxu0
    %v179 = vadd.f32 0.0, %v178
    %180 = vdwg.mxu0
    %s181 = scalar_lea.vmem [#allocation7], 128
    %v182 = vld [vmem:[%s181] sm:$0xff]
    %v183 = vld [vmem:[%s181 + $0x8] sm:$0xff]
    %v184 = vld [vmem:[%s181 + $0x10] sm:$0xff]
    %v185 = vld [vmem:[%s181 + $0x18] sm:$0xff]
    %v186 = vld [vmem:[%s181 + $0x20] sm:$0xff]
    %v187 = vld [vmem:[%s181 + $0x28] sm:$0xff]
    %v188 = vld [vmem:[%s181 + $0x30] sm:$0xff]
    %v189 = vld [vmem:[%s181 + $0x38] sm:$0xff]
    %v190 = vld [vmem:[%s181 + $0x40] sm:$0xff]
    %v191 = vld [vmem:[%s181 + $0x48] sm:$0xff]
    %v192 = vld [vmem:[%s181 + $0x50] sm:$0xff]
    %v193 = vld [vmem:[%s181 + $0x58] sm:$0xff]
    %v194 = vld [vmem:[%s181 + $0x60] sm:$0xff]
    %v195 = vld [vmem:[%s181 + $0x68] sm:$0xff]
    %v196 = vld [vmem:[%s181 + $0x70] sm:$0xff]
    %v197 = vld [vmem:[%s181 + $0x78] sm:$0xff]
    %s198 = scalar_lea.vmem [#allocation8], 16
    %v199 = vld [vmem:[%s198] sm:$0xff]
    %v200 = vld [vmem:[%s198 + $0x8] sm:$0xff]
    %201 = vmatpush.msra.mxu0 %v197
    %202 = vmatpush.msra.mxu0 %v196
    %203 = vmatpush.msra.mxu0 %v195
    %204 = vmatpush.msra.mxu0 %v194
    %205 = vmatpush.msra.mxu0 %v193
    %206 = vmatpush.msra.mxu0 %v192
    %207 = vmatpush.msra.mxu0 %v191
    %208 = vmatpush.msra.mxu0 %v190
    %209 = vmatpush.msra.mxu0 %v189
    %210 = vmatpush.msra.mxu0 %v188
    %211 = vmatpush.msra.mxu0 %v187
    %212 = vmatpush.msra.mxu0 %v186
    %213 = vmatpush.msra.mxu0 %v185
    %214 = vmatpush.msra.mxu0 %v184
    %215 = vmatpush.msra.mxu0 %v183
    %216 = vmatpush.msra.mxu0 %v182
    %217 = vmatmul.f32.gmra.mxu0 %v176
    %v218 = vpop.f32.mrf.mxu0
    %v219 = vadd.f32 %v199, %v218
    %220 = vmatmul.f32.gmra.mxu0 %v179
    %v221 = vpop.f32.mrf.mxu0
    %v222 = vadd.f32 %v200, %v221
    %223 = vdwg.mxu0
    %v224 = vmax.f32 %v219, 0.0
    %v225 = vmax.f32 %v222, 0.0
    %226 = vst [vmem:[#allocation10] sm:$0xff] %v224
    %227 = vst [vmem:[#allocation10 + $0x8] sm:$0xff] %v225
    // Predicated region
    $region34: #{tpu_custom_call.1} parent=1 // pred_check
      _
    $region35: #{tpu_custom_call.1} parent=1 // pred_check_branch
      %229 = sbr.rel (0) target = $region37
    $region36: #{tpu_custom_call.1} parent=1 // pred_region
      %231 = vsyncadd [#allocation4], 0
      %s232 = sshll.u32 [#allocation10], 4
      %s233 = int_to_ptr.vmem [resolvable:$true] %s232
      %s234 = sshll.u32 %s4, 4
      %s235 = int_to_ptr.hbm [resolvable:$true] %s234
      %240 = dma.vmem_to_hbm [thread:$0]  %s233, 256, %s235, [#allocation4], 128, 128, 8
    $region37: #{tpu_custom_call.1} parent=1 // pred_fallthru
      _
    // Predicated region
    $region38: #{tpu_custom_call.1} parent=1 // pred_check
      _
    $region39: #{tpu_custom_call.1} parent=1 // pred_check_branch
      %242 = sbr.rel (0) target = $region41
    $region40: #{tpu_custom_call.1} parent=1 // pred_region
      %244 = dma.done [#allocation4], 256
    $region41: #{tpu_custom_call.1} parent=1 // pred_fallthru
      _
    %245 = vsyncpa [#allocation3], 1
    %246 = vsyncpa [#allocation6], 1
    %247 = vsyncpa [#allocation9], 1
    %248 = vsyncpa [#allocation4], 1

</llo_original>
